<compile_context>
chip_gen: v7x
topology: tpu7x:2x2x1
jax: 0.10.0
libtpu: 0.0.40
codegen_flags: <defaults>
</compile_context>

<pallas_src>
import functools

import jax
import jax.numpy as jnp
from jax.experimental import pallas as pl
from jax.experimental.pallas import tpu as pltpu


# ----------------------------------------------------------------------------
# Fused kernel:  BN1 -> ReLU -> matmul(V, bf16) -> +bias -> dual segment softmax
# ----------------------------------------------------------------------------
def fused_head_kernel(x_ref, s1_ref, sh1_ref, v_ref, b_ref, out_ref):
    # x_ref   : (TB, CS)   f32  flattened NCHW input rows, CS = C * H * W
    # s1_ref  : (1, CS)    f32  folded BatchNorm2d(nfilters_in) scale (repeated over S)
    # sh1_ref : (1, CS)    f32  folded BatchNorm2d(nfilters_in) shift (repeated over S)
    # v_ref   : (CS, 2P)   bf16 effective weight (conv1x1 + BN2 + both Linears folded)
    # b_ref   : (1, 2P)    f32  effective bias
    # out_ref : (TB, 2P)   f32  [softmax(head0) | softmax(head1)]  (lane-dense slab)
    two_p = out_ref.shape[-1]
    p = two_p // 2

    # BN1 (eval) + ReLU on the VPU.
    h = jnp.maximum(x_ref[...] * s1_ref[...] + sh1_ref[...], 0.0)          # (TB, CS)

    # Single MXU matmul covering conv1x1 + BN2 + both dense layers (f32 accumulate).
    logits = jnp.dot(h.astype(v_ref.dtype), v_ref[...],
                     preferred_element_type=jnp.float32)                   # (TB, 2P)
    logits = logits + b_ref[...]

    # Dual softmax as full-width masked segment reductions: lanes [0, P) are head 0,
    # lanes [P, 2P) are head 1. No sub-128-lane slicing, one lane-dense store.
    lane = jax.lax.broadcasted_iota(jnp.int32, logits.shape, dimension=1)
    is_h0 = lane < p
    neg_inf = jnp.float32(-jnp.inf)

    m0 = jnp.max(jnp.where(is_h0, logits, neg_inf), axis=-1, keepdims=True)
    m1 = jnp.max(jnp.where(is_h0, neg_inf, logits), axis=-1, keepdims=True)
    m = jnp.where(is_h0, m0, m1)

    e = jnp.exp(logits - m)                                                # EUP
    sum0 = jnp.sum(jnp.where(is_h0, e, 0.0), axis=-1, keepdims=True)
    sum1 = jnp.sum(jnp.where(is_h0, 0.0, e), axis=-1, keepdims=True)
    denom = jnp.where(is_h0, sum0, sum1)

    # Exact divide (compute is slack; rows sum to 1 for downstream sampling/log-probs).
    out_ref[...] = (e / denom).astype(out_ref.dtype)


# ----------------------------------------------------------------------------
# One-time parameter fold (run at model load, NOT per forward call)
# ----------------------------------------------------------------------------
def fold_dense_policy_head_params(params, *, eps=1e-5, weight_dtype=jnp.bfloat16):
    """Fold BN1, conv1x1, BN2 and both Linear layers into kernel operands."""
    wc = params["conv_w"]                                   # (M, C)
    m_ch, c_in = wc.shape
    p_sz, f_sz = params["dense_w"].shape                    # (P, M*S)
    s_sz = f_sz // m_ch                                     # state_plane_size
    cs = c_in * s_sz

    # BatchNorm (eval) -> per-channel scale / shift.
    s1 = params["bn1_gamma"] * jax.lax.rsqrt(params["bn1_var"] + eps)
    sh1 = params["bn1_beta"] - params["bn1_mean"] * s1
    s2 = params["bn2_gamma"] * jax.lax.rsqrt(params["bn2_var"] + eps)
    sh2 = params["bn2_beta"] - params["bn2_mean"] * s2

    # Concatenate both dense heads: flat index in the Linear input is m*S + s
    # (matches p.view(B, -1) of the (B, M, H, W) tensor).
    w2 = jnp.concatenate([params["dense_w"], params["aux_w"]], axis=0)     # (2P, F)
    b2 = jnp.concatenate([params["dense_b"], params["aux_b"]], axis=0)     # (2P,)
    w2r = w2.reshape(2 * p_sz, m_ch, s_sz)

    # V[c*S + s, k] = sum_m w2[k, m*S + s] * s2[m] * wc[m, c]
    v_eff = jnp.einsum("kms,m,mc->csk", w2r, s2, wc).reshape(cs, 2 * p_sz)
    # beff[k] = b2[k] + sum_{m,s} w2[k, m*S + s] * sh2[m]
    b_eff = (b2 + jnp.einsum("kms,m->k", w2r, sh2)).reshape(1, 2 * p_sz)

    return {
        "v": v_eff.astype(weight_dtype),                    # (CS, 2P) bf16
        "b": b_eff.astype(jnp.float32),                     # (1, 2P)
        "s1": jnp.repeat(s1, s_sz).reshape(1, cs).astype(jnp.float32),
        "sh1": jnp.repeat(sh1, s_sz).reshape(1, cs).astype(jnp.float32),
    }


# ----------------------------------------------------------------------------
# Forward wrapper
# ----------------------------------------------------------------------------
def dense_policy_head(x_nchw, folded, *, block_b=None):
    """Pallas implementation of DensePolicyHead.forward (eval-mode BN)."""
    B, C, H, W = x_nchw.shape
    CS = folded["s1"].shape[1]
    two_p = folded["b"].shape[1]
    P = two_p // 2
    assert CS == C * H * W, (CS, C, H, W)

    # Flatten NCHW exactly like the kernel expects: index = c*S + (h*W + w).
    x_flat = x_nchw.reshape(B, CS).astype(jnp.float32)

    if block_b is None:
        # Aim for >= 2 grid steps so both v7x TensorCores get work (the grid axis is
        # "parallel"); round the tile to the sublane quantum (8) and cap at 256 MXU rows.
        # If that tile would cover the whole batch anyway, just use the full batch.
        # NOTE: if block_b does not divide B, the padded tail rows hold unspecified VMEM
        # data; their (discarded) softmax outputs may be non-finite — harmless, but pick
        # a divisor of B if NaN-checking tooling is in the loop.
        half = ((pl.cdiv(B, 2) + 7) // 8) * 8
        block_b = B if half >= B else min(half, 256)
    block_b = min(block_b, B)
    grid = (pl.cdiv(B, block_b),)

    cost = pl.CostEstimate(
        flops=2 * B * CS * two_p,
        transcendentals=B * two_p,
        bytes_accessed=(B * CS * x_flat.dtype.itemsize
                        + CS * two_p * folded["v"].dtype.itemsize
                        + B * two_p * 4),
    )

    out = pl.pallas_call(
        fused_head_kernel,
        out_shape=jax.ShapeDtypeStruct((B, two_p), jnp.float32),
        grid=grid,
        in_specs=[
            pl.BlockSpec((block_b, CS), lambda i: (i, 0)),      # x rows (streamed)
            pl.BlockSpec((1, CS), lambda i: (0, 0)),            # BN1 scale (resident)
            pl.BlockSpec((1, CS), lambda i: (0, 0)),            # BN1 shift (resident)
            pl.BlockSpec((CS, two_p), lambda i: (0, 0)),        # V        (resident)
            pl.BlockSpec((1, two_p), lambda i: (0, 0)),         # bias     (resident)
        ],
        out_specs=pl.BlockSpec((block_b, two_p), lambda i: (i, 0)),  # lane-dense slab
        compiler_params=pltpu.CompilerParams(dimension_semantics=("parallel",)),
        cost_estimate=cost,
    )(x_flat, folded["s1"], folded["sh1"], folded["v"], folded["b"])

    # Free metadata reshape to the module's (B, 2, P) output layout.
    return out.reshape(B, 2, P)


# ----------------------------------------------------------------------------
# Pure-JAX reference (mirrors the PyTorch forward, eval-mode BN, full f32)
# ----------------------------------------------------------------------------
def reference(x_nchw, params):
    eps = 1e-5
    B = x_nchw.shape[0]

    def bn(x, g, b, m, v):
        return (x - m[None, :, None, None]) / jnp.sqrt(v[None, :, None, None] + eps) \
            * g[None, :, None, None] + b[None, :, None, None]

    h = jnp.maximum(bn(x_nchw, params["bn1_gamma"], params["bn1_beta"],
                       params["bn1_mean"], params["bn1_var"]), 0.0)
    conv = jnp.einsum("bchw,mc->bmhw", h, params["conv_w"])
    p2 = bn(conv, params["bn2_gamma"], params["bn2_beta"],
            params["bn2_mean"], params["bn2_var"])
    flat = p2.reshape(B, -1)
    l0 = flat @ params["dense_w"].T + params["dense_b"]
    l1 = flat @ params["aux_w"].T + params["aux_b"]
    logits = jnp.stack([l0, l1], axis=1)
    return jax.nn.softmax(logits, axis=2)


# ----------------------------------------------------------------------------
# Main
# ----------------------------------------------------------------------------
if __name__ == "__main__":
    # Small, module-consistent shapes.
    B, C_IN, H, W = 2, 4, 8, 8           # input planes
    M = 16                               # nfilters_mid
    STATE_PLANE_SIZE = H * W             # 64
    POLICY_SIZE = 32
    F = STATE_PLANE_SIZE * M             # 1024

    key = jax.random.PRNGKey(0)
    keys = jax.random.split(key, 16)

    params = {
        # BatchNorm2d(nfilters_in)
        "bn1_gamma": jax.random.uniform(keys[0], (C_IN,), jnp.float32, 0.5, 1.5),
        "bn1_beta":  jax.random.normal(keys[1], (C_IN,), jnp.float32) * 0.1,
        "bn1_mean":  jax.random.normal(keys[2], (C_IN,), jnp.float32) * 0.1,
        "bn1_var":   jax.random.uniform(keys[3], (C_IN,), jnp.float32, 0.5, 1.5),
        # Conv2d(nfilters_in, nfilters_mid, kernel_size=1, bias=False) -> (M, C)
        "conv_w":    jax.random.normal(keys[4], (M, C_IN), jnp.float32) * 0.2,
        # BatchNorm2d(nfilters_mid)
        "bn2_gamma": jax.random.uniform(keys[5], (M,), jnp.float32, 0.5, 1.5),
        "bn2_beta":  jax.random.normal(keys[6], (M,), jnp.float32) * 0.1,
        "bn2_mean":  jax.random.normal(keys[7], (M,), jnp.float32) * 0.1,
        "bn2_var":   jax.random.uniform(keys[8], (M,), jnp.float32, 0.5, 1.5),
        # Linear(state_plane_size * nfilters_mid, policy_size) x2
        "dense_w":   jax.random.normal(keys[9], (POLICY_SIZE, F), jnp.float32) * 0.05,
        "dense_b":   jax.random.normal(keys[10], (POLICY_SIZE,), jnp.float32) * 0.05,
        "aux_w":     jax.random.normal(keys[11], (POLICY_SIZE, F), jnp.float32) * 0.05,
        "aux_b":     jax.random.normal(keys[12], (POLICY_SIZE,), jnp.float32) * 0.05,
    }

    x = jax.random.normal(keys[13], (B, C_IN, H, W), jnp.float32)

    # One-time fold at "model load" (kept out of the per-call jit path).
    folded = jax.tree_util.tree_map(jax.block_until_ready,
                                    fold_dense_policy_head_params(params))

    head = jax.jit(dense_policy_head)
    out = jax.block_until_ready(head(x, folded))

    ref = reference(x, params)
    assert out.shape == (B, 2, POLICY_SIZE), out.shape
    # Tolerance accounts for the algebraic weight fold (different summation order)
    # and bf16 matmul operands (f32 accumulation); probabilities are O(1/P) so the
    # resulting softmax error is ~1e-4, well inside this bound.
    assert jnp.allclose(out, ref, atol=5e-3, rtol=5e-3), \
        f"max abs err = {jnp.max(jnp.abs(out - ref))}"

    print("KERNEL_OK")
</pallas_src>

<mosaic_0001>
module attributes {stable_mosaic.version = 11 : i64} {
  func.func @fused_head_kernel(%arg0: i32, %arg1: memref<2x256xf32, #tpu.memory_space<vmem>>, %arg2: memref<1x256xf32, #tpu.memory_space<vmem>>, %arg3: memref<1x256xf32, #tpu.memory_space<vmem>>, %arg4: memref<256x64xbf16, #tpu.memory_space<vmem>>, %arg5: memref<1x64xf32, #tpu.memory_space<vmem>>, %arg6: memref<2x64xf32, #tpu.memory_space<vmem>>) attributes {dimension_semantics = [#tpu.dimension_semantics<parallel>], iteration_bounds = array<i64: 1>, scalar_prefetch = 0 : i64, scratch_operands = 0 : i64, tpu.core_type = #tpu.core_type<tc>, window_params = [{transform_indices = @transform_0, window_bounds = array<i64: 2, 256>}, {pipeline_mode = #tpu.pipeline_mode<synchronous>, transform_indices = @transform_1, window_bounds = array<i64: 1, 256>}, {pipeline_mode = #tpu.pipeline_mode<synchronous>, transform_indices = @transform_2, window_bounds = array<i64: 1, 256>}, {pipeline_mode = #tpu.pipeline_mode<synchronous>, transform_indices = @transform_3, window_bounds = array<i64: 256, 64>}, {pipeline_mode = #tpu.pipeline_mode<synchronous>, transform_indices = @transform_4, window_bounds = array<i64: 1, 64>}, {transform_indices = @transform_5, window_bounds = array<i64: 2, 64>}]} {
    %c0 = arith.constant 0 : index
    %c0_0 = arith.constant 0 : index
    %0 = vector.load %arg1[%c0, %c0_0] : memref<2x256xf32, #tpu.memory_space<vmem>>, vector<2x256xf32>
    %c0_1 = arith.constant 0 : index
    %c0_2 = arith.constant 0 : index
    %1 = vector.load %arg2[%c0_1, %c0_2] : memref<1x256xf32, #tpu.memory_space<vmem>>, vector<1x256xf32>
    %2 = vector.broadcast %1 : vector<1x256xf32> to vector<2x256xf32>
    %3 = arith.mulf %0, %2 : vector<2x256xf32>
    %c0_3 = arith.constant 0 : index
    %c0_4 = arith.constant 0 : index
    %4 = vector.load %arg3[%c0_3, %c0_4] : memref<1x256xf32, #tpu.memory_space<vmem>>, vector<1x256xf32>
    %5 = vector.broadcast %4 : vector<1x256xf32> to vector<2x256xf32>
    %6 = arith.addf %3, %5 : vector<2x256xf32>
    %cst = arith.constant 0.000000e+00 : f32
    %7 = vector.broadcast %cst : f32 to vector<2x256xf32>
    %8 = arith.maximumf %6, %7 : vector<2x256xf32>
    %9 = arith.truncf %8 : vector<2x256xf32> to vector<2x256xbf16>
    %c0_5 = arith.constant 0 : index
    %c0_6 = arith.constant 0 : index
    %10 = vector.load %arg4[%c0_5, %c0_6] : memref<256x64xbf16, #tpu.memory_space<vmem>>, vector<256x64xbf16>
    %cst_7 = arith.constant dense<0.000000e+00> : vector<2x64xf32>
    %11 = tpu.matmul %9, %10, %cst_7 {dimension_numbers = #tpu.dot_dimension_numbers<[1], [0], [0], [1], [0, 0, 1, 1], [], []>} : vector<2x256xbf16>, vector<256x64xbf16>, vector<2x64xf32> -> vector<2x64xf32>
    %c0_8 = arith.constant 0 : index
    %c0_9 = arith.constant 0 : index
    %12 = vector.load %arg5[%c0_8, %c0_9] : memref<1x64xf32, #tpu.memory_space<vmem>>, vector<1x64xf32>
    %13 = vector.broadcast %12 : vector<1x64xf32> to vector<2x64xf32>
    %14 = arith.addf %11, %13 : vector<2x64xf32>
    %15 = tpu.iota {dimensions = array<i32: 1>} : vector<2x64xi32>
    %c32_i32 = arith.constant 32 : i32
    %16 = vector.broadcast %c32_i32 : i32 to vector<2x64xi32>
    %17 = arith.cmpi slt, %15, %16 : vector<2x64xi32>
    %cst_10 = arith.constant 0xFF800000 : f32
    %18 = vector.broadcast %cst_10 : f32 to vector<2x64xf32>
    %19 = arith.select %17, %14, %18 : vector<2x64xi1>, vector<2x64xf32>
    %cst_11 = arith.constant dense<0xFF800000> : vector<2xf32>
    %20 = vector.multi_reduction <maximumf>, %19, %cst_11 [1] : vector<2x64xf32> to vector<2xf32>
    %21 = vector.shape_cast %20 : vector<2xf32> to vector<2x1xf32>
    %cst_12 = arith.constant 0xFF800000 : f32
    %22 = vector.broadcast %cst_12 : f32 to vector<2x64xf32>
    %23 = arith.select %17, %22, %14 : vector<2x64xi1>, vector<2x64xf32>
    %cst_13 = arith.constant dense<0xFF800000> : vector<2xf32>
    %24 = vector.multi_reduction <maximumf>, %23, %cst_13 [1] : vector<2x64xf32> to vector<2xf32>
    %25 = vector.shape_cast %24 : vector<2xf32> to vector<2x1xf32>
    %26 = vector.shape_cast %21 : vector<2x1xf32> to vector<2x1xf32>
    %27 = vector.broadcast %26 : vector<2x1xf32> to vector<2x64xf32>
    %28 = vector.shape_cast %25 : vector<2x1xf32> to vector<2x1xf32>
    %29 = vector.broadcast %28 : vector<2x1xf32> to vector<2x64xf32>
    %30 = arith.select %17, %27, %29 : vector<2x64xi1>, vector<2x64xf32>
    %31 = arith.subf %14, %30 : vector<2x64xf32>
    %32 = math.exp %31 : vector<2x64xf32>
    %cst_14 = arith.constant 0.000000e+00 : f32
    %33 = vector.broadcast %cst_14 : f32 to vector<2x64xf32>
    %34 = arith.select %17, %32, %33 : vector<2x64xi1>, vector<2x64xf32>
    %cst_15 = arith.constant dense<0.000000e+00> : vector<2xf32>
    %35 = vector.multi_reduction <add>, %34, %cst_15 [1] : vector<2x64xf32> to vector<2xf32>
    %36 = vector.shape_cast %35 : vector<2xf32> to vector<2x1xf32>
    %cst_16 = arith.constant 0.000000e+00 : f32
    %37 = vector.broadcast %cst_16 : f32 to vector<2x64xf32>
    %38 = arith.select %17, %37, %32 : vector<2x64xi1>, vector<2x64xf32>
    %cst_17 = arith.constant dense<0.000000e+00> : vector<2xf32>
    %39 = vector.multi_reduction <add>, %38, %cst_17 [1] : vector<2x64xf32> to vector<2xf32>
    %40 = vector.shape_cast %39 : vector<2xf32> to vector<2x1xf32>
    %41 = vector.shape_cast %36 : vector<2x1xf32> to vector<2x1xf32>
    %42 = vector.broadcast %41 : vector<2x1xf32> to vector<2x64xf32>
    %43 = vector.shape_cast %40 : vector<2x1xf32> to vector<2x1xf32>
    %44 = vector.broadcast %43 : vector<2x1xf32> to vector<2x64xf32>
    %45 = arith.select %17, %42, %44 : vector<2x64xi1>, vector<2x64xf32>
    %46 = arith.divf %32, %45 : vector<2x64xf32>
    %c0_18 = arith.constant 0 : index
    %c0_19 = arith.constant 0 : index
    %47 = vector.load %arg6[%c0_18, %c0_19] : memref<2x64xf32, #tpu.memory_space<vmem>>, vector<2x64xf32>
    tpu.vector_store %arg6[%c0_18, %c0_19], %46 {strides = array<i32>} : memref<2x64xf32, #tpu.memory_space<vmem>>, vector<2x64xf32>,
    return
  }
  func.func @transform_0(%arg0: i32) -> (i32, i32) {
    %c0_i32 = arith.constant 0 : i32
    %c0_i32_0 = arith.constant 0 : i32
    return %arg0, %c0_i32 : i32, i32
  }
  func.func @transform_1(%arg0: i32) -> (i32, i32) {
    %c0_i32 = arith.constant 0 : i32
    %c0_i32_0 = arith.constant 0 : i32
    %c0_i32_1 = arith.constant 0 : i32
    return %c0_i32, %c0_i32_0 : i32, i32
  }
  func.func @transform_2(%arg0: i32) -> (i32, i32) {
    %c0_i32 = arith.constant 0 : i32
    %c0_i32_0 = arith.constant 0 : i32
    %c0_i32_1 = arith.constant 0 : i32
    return %c0_i32, %c0_i32_0 : i32, i32
  }
  func.func @transform_3(%arg0: i32) -> (i32, i32) {
    %c0_i32 = arith.constant 0 : i32
    %c0_i32_0 = arith.constant 0 : i32
    %c0_i32_1 = arith.constant 0 : i32
    return %c0_i32, %c0_i32_0 : i32, i32
  }
  func.func @transform_4(%arg0: i32) -> (i32, i32) {
    %c0_i32 = arith.constant 0 : i32
    %c0_i32_0 = arith.constant 0 : i32
    %c0_i32_1 = arith.constant 0 : i32
    return %c0_i32, %c0_i32_0 : i32, i32
  }
  func.func @transform_5(%arg0: i32) -> (i32, i32) {
    %c0_i32 = arith.constant 0 : i32
    %c0_i32_0 = arith.constant 0 : i32
    return %arg0, %c0_i32 : i32, i32
  }
}

</mosaic_0001>

<llo_original>
// kernel: dense_policy_head.1
$region0: #{dense_policy_head.1}
  #allocation0 [shape = 'u32[]', space=smem, size = 0x4, offset = 0x4, fixed_abs, tag = 'smem constant byte address 0x4 - core index']
  #allocation1 [shape = 'u32[144,128]{1,0:T(1,128)}', space=vmem, size = 0x12000, scoped, tag = 'internal scratch']
  %s0 = inlined_call_operand.vmem [shape: f32[2,256], index: 0, kind: input, shape index: {}]
  %s1 = inlined_call_operand.vmem [shape: f32[1,256], index: 1, kind: input, shape index: {}]
  %s2 = inlined_call_operand.vmem [shape: f32[1,256], index: 2, kind: input, shape index: {}]
  %s3 = inlined_call_operand.vmem [shape: bf16[256,64], index: 3, kind: input, shape index: {}]
  %s4 = inlined_call_operand.vmem [shape: f32[1,64], index: 4, kind: input, shape index: {}]
  %s5 = inlined_call_operand.vmem [shape: f32[2,64], index: 5, kind: output, shape index: {}]
  %s6 = sld [smem:[#allocation0]]
  $region30: #{dense_policy_head.1} parent=0
    _
  %s8 = ssub.s32 1, %s6
  %s9 = scalar_select 0, %s8, %s6
  // Predicated region
  $region2: #{dense_policy_head.1} parent=0 // pred_check
    _
  $region3: #{dense_policy_head.1} parent=0 // pred_check_branch
    %11 = sbr.rel (0) target = $region5
  $region4: #{dense_policy_head.1} parent=0 // pred_region
    _
  $region5: #{dense_policy_head.1} parent=0 // pred_fallthru
    _
  // Predicated region
  $region6: #{dense_policy_head.1} parent=0 // pred_check
    _
  $region7: #{dense_policy_head.1} parent=0 // pred_check_branch
    %13 = sbr.rel (0) target = $region9
  $region8: #{dense_policy_head.1} parent=0 // pred_region
    _
  $region9: #{dense_policy_head.1} parent=0 // pred_fallthru
    _
  // Predicated region
  $region10: #{dense_policy_head.1} parent=0 // pred_check
    _
  $region11: #{dense_policy_head.1} parent=0 // pred_check_branch
    %15 = sbr.rel (0) target = $region13
  $region12: #{dense_policy_head.1} parent=0 // pred_region
    _
  $region13: #{dense_policy_head.1} parent=0 // pred_fallthru
    _
  // Predicated region
  $region14: #{dense_policy_head.1} parent=0 // pred_check
    _
  $region15: #{dense_policy_head.1} parent=0 // pred_check_branch
    %17 = sbr.rel (0) target = $region17
  $region16: #{dense_policy_head.1} parent=0 // pred_region
    _
  $region17: #{dense_policy_head.1} parent=0 // pred_fallthru
    _
  // Predicated region
  $region18: #{dense_policy_head.1} parent=0 // pred_check
    _
  $region19: #{dense_policy_head.1} parent=0 // pred_check_branch
    %19 = sbr.rel (0) target = $region21
  $region20: #{dense_policy_head.1} parent=0 // pred_region
    _
  $region21: #{dense_policy_head.1} parent=0 // pred_fallthru
    _
  %v21 = vld [vmem:[%s0] sm:$0xf]
  %v22 = vld [vmem:[%s1] sm:$0x3]
  %v24 = vlaneseq
  %v25 = vshrl.u32 %v24, 7
  %v26 = vsub.s32 0, %v25
  %v27 = vrot.slane %v22, %v26
  %v28 = vlaneseq
  %v29 = vshrl.u32 %v28, 7
  %v30 = vsub.s32 1, %v29
  %v31 = vrot.slane %v22, %v30
  %v32 = vcombine.low %v27, %v31
  %v34 = vunpack.c.l.s4 1983009808
  %v35 = vunpack.c.0.s8 %v34
  %v36 = vlaneseq
  %v37 = vshrl.u32 %v36, 7
  %v38 = vsub.s32 %v35, %v37
  %v39 = vrot.slane %v32, %v38
  %v41 = vmul.f32 %v21, %v39
  %v42 = vld [vmem:[%s2] sm:$0x3]
  %v44 = vlaneseq
  %v45 = vshrl.u32 %v44, 7
  %v46 = vsub.s32 0, %v45
  %v47 = vrot.slane %v42, %v46
  %v48 = vlaneseq
  %v49 = vshrl.u32 %v48, 7
  %v50 = vsub.s32 1, %v49
  %v51 = vrot.slane %v42, %v50
  %v52 = vcombine.low %v47, %v51
  %v54 = vunpack.c.l.s4 1983009808
  %v55 = vunpack.c.0.s8 %v54
  %v56 = vlaneseq
  %v57 = vshrl.u32 %v56, 7
  %v58 = vsub.s32 %v55, %v57
  %v59 = vrot.slane %v52, %v58
  %v61 = vadd.f32 %v41, %v59
  %v62 = vmax.f32 %v61, 0.0
  %v65 = vunpack.c.l.s4 1983009808
  %v66 = vunpack.c.0.s8 %v65
  %v67 = vlaneseq
  %v68 = vshrl.u32 %v67, 7
  %v69 = vsub.s32 %v66, %v68
  %v70 = vrot.slane %v62, %v69
  %v71 = vcombine.high %v70, %v70
  %v74 = vpack.c.bf16 %v70, %v70
  %v75 = vpack.c.bf16 %v71, %v71
  %v76 = vld [vmem:[%s3] sm:$0xf]
  %v77 = vld [vmem:[%s3 + $0x4] sm:$0xf]
  %v78 = vld [vmem:[%s3 + $0x8] sm:$0xf]
  %v79 = vld [vmem:[%s3 + $0xc] sm:$0xf]
  %v80 = vld [vmem:[%s3 + $0x10] sm:$0xf]
  %v81 = vld [vmem:[%s3 + $0x14] sm:$0xf]
  %v82 = vld [vmem:[%s3 + $0x18] sm:$0xf]
  %v83 = vld [vmem:[%s3 + $0x1c] sm:$0xf]
  %v84 = vld [vmem:[%s3 + $0x20] sm:$0xf]
  %v85 = vld [vmem:[%s3 + $0x24] sm:$0xf]
  %v86 = vld [vmem:[%s3 + $0x28] sm:$0xf]
  %v87 = vld [vmem:[%s3 + $0x2c] sm:$0xf]
  %v88 = vld [vmem:[%s3 + $0x30] sm:$0xf]
  %v89 = vld [vmem:[%s3 + $0x34] sm:$0xf]
  %v90 = vld [vmem:[%s3 + $0x38] sm:$0xf]
  %v91 = vld [vmem:[%s3 + $0x3c] sm:$0xf]
  %v92 = vld [vmem:[%s3 + $0x40] sm:$0xf]
  %v93 = vld [vmem:[%s3 + $0x44] sm:$0xf]
  %v94 = vld [vmem:[%s3 + $0x48] sm:$0xf]
  %v95 = vld [vmem:[%s3 + $0x4c] sm:$0xf]
  %v96 = vld [vmem:[%s3 + $0x50] sm:$0xf]
  %v97 = vld [vmem:[%s3 + $0x54] sm:$0xf]
  %v98 = vld [vmem:[%s3 + $0x58] sm:$0xf]
  %v99 = vld [vmem:[%s3 + $0x5c] sm:$0xf]
  %v100 = vld [vmem:[%s3 + $0x60] sm:$0xf]
  %v101 = vld [vmem:[%s3 + $0x64] sm:$0xf]
  %v102 = vld [vmem:[%s3 + $0x68] sm:$0xf]
  %v103 = vld [vmem:[%s3 + $0x6c] sm:$0xf]
  %v104 = vld [vmem:[%s3 + $0x70] sm:$0xf]
  %v105 = vld [vmem:[%s3 + $0x74] sm:$0xf]
  %v106 = vld [vmem:[%s3 + $0x78] sm:$0xf]
  %v107 = vld [vmem:[%s3 + $0x7c] sm:$0xf]
  %v108 = vld [vmem:[%s4] sm:$0x1]
  %v110 = vlaneseq
  %v111 = vshrl.u32 %v110, 7
  %v112 = vsub.s32 0, %v111
  %v113 = vrot.slane %v108, %v112
  %v147 = vunpack.c.l.b16 %v76
  %v148 = vunpack.c.l.b16 %v77
  %v149 = vunpack.c.l.b16 %v78
  %v150 = vunpack.c.l.b16 %v79
  %v151 = vunpack.c.l.b16 %v80
  %v152 = vunpack.c.l.b16 %v81
  %v153 = vunpack.c.l.b16 %v82
  %v154 = vunpack.c.l.b16 %v83
  %v155 = vunpack.c.l.b16 %v84
  %v156 = vunpack.c.l.b16 %v85
  %v157 = vunpack.c.l.b16 %v86
  %v158 = vunpack.c.l.b16 %v87
  %v159 = vunpack.c.l.b16 %v88
  %v160 = vunpack.c.l.b16 %v89
  %v161 = vunpack.c.l.b16 %v90
  %v162 = vunpack.c.l.b16 %v91
  %v163 = vunpack.c.l.b16 %v92
  %v164 = vunpack.c.l.b16 %v93
  %v165 = vunpack.c.l.b16 %v94
  %v166 = vunpack.c.l.b16 %v95
  %v167 = vunpack.c.l.b16 %v96
  %v168 = vunpack.c.l.b16 %v97
  %v169 = vunpack.c.l.b16 %v98
  %v170 = vunpack.c.l.b16 %v99
  %v171 = vunpack.c.l.b16 %v100
  %v172 = vunpack.c.l.b16 %v101
  %v173 = vunpack.c.l.b16 %v102
  %v174 = vunpack.c.l.b16 %v103
  %v175 = vunpack.c.l.b16 %v104
  %v176 = vunpack.c.l.b16 %v105
  %v177 = vunpack.c.l.b16 %v106
  %v178 = vunpack.c.l.b16 %v107
  %v179 = vpack.c.b16 %v148, %v147
  %v180 = vpack.c.b16 %v150, %v149
  %v181 = vpack.c.b16 %v152, %v151
  %v182 = vpack.c.b16 %v154, %v153
  %v183 = vpack.c.b16 %v156, %v155
  %v184 = vpack.c.b16 %v158, %v157
  %v185 = vpack.c.b16 %v160, %v159
  %v186 = vpack.c.b16 %v162, %v161
  %v187 = vpack.c.b16 %v164, %v163
  %v188 = vpack.c.b16 %v166, %v165
  %v189 = vpack.c.b16 %v168, %v167
  %v190 = vpack.c.b16 %v170, %v169
  %v191 = vpack.c.b16 %v172, %v171
  %v192 = vpack.c.b16 %v174, %v173
  %v193 = vpack.c.b16 %v176, %v175
  %v194 = vpack.c.b16 %v178, %v177
  %211 = vmatprep.subr.bf16.mxu0 0
  %212 = vmatpush1.bf16.msra.mxu0 %v179
  %213 = vmatprep.subr.bf16.mxu0 0
  %214 = vmatpush1.bf16.msra.mxu0 %v180
  %215 = vmatprep.subr.bf16.mxu0 0
  %216 = vmatpush1.bf16.msra.mxu0 %v181
  %217 = vmatprep.subr.bf16.mxu0 0
  %218 = vmatpush1.bf16.msra.mxu0 %v182
  %219 = vmatprep.subr.bf16.mxu0 0
  %220 = vmatpush1.bf16.msra.mxu0 %v183
  %221 = vmatprep.subr.bf16.mxu0 0
  %222 = vmatpush1.bf16.msra.mxu0 %v184
  %223 = vmatprep.subr.bf16.mxu0 0
  %224 = vmatpush1.bf16.msra.mxu0 %v185
  %225 = vmatprep.subr.bf16.mxu0 0
  %226 = vmatpush1.bf16.msra.mxu0 %v186
  %227 = vmatprep.subr.bf16.mxu0 0
  %228 = vmatpush1.bf16.msra.mxu0 %v187
  %229 = vmatprep.subr.bf16.mxu0 0
  %230 = vmatpush1.bf16.msra.mxu0 %v188
  %231 = vmatprep.subr.bf16.mxu0 0
  %232 = vmatpush1.bf16.msra.mxu0 %v189
  %233 = vmatprep.subr.bf16.mxu0 0
  %234 = vmatpush1.bf16.msra.mxu0 %v190
  %235 = vmatprep.subr.bf16.mxu0 0
  %236 = vmatpush1.bf16.msra.mxu0 %v191
  %237 = vmatprep.subr.bf16.mxu0 0
  %238 = vmatpush1.bf16.msra.mxu0 %v192
  %239 = vmatprep.subr.bf16.mxu0 0
  %240 = vmatpush1.bf16.msra.mxu0 %v193
  %241 = vmatprep.subr.bf16.mxu0 0
  %242 = vmatpush1.bf16.msra.mxu0 %v194
  %243 = vmatprep.mubr.bf16.mxu0 %v75
  %244 = vmatmul.mubr.bf16.gmra.mrb[0].mxu0 %v74
  %v245 = vpop.f32.mrb[0].mxu0
  %v246 = vadd.f32 %v113, %v245
  %v247 = vpop.f32.mrb[0].mxu0
  %v248 = vpop.f32.mrb[0].mxu0
  %v249 = vpop.f32.mrb[0].mxu0
  %250 = vdwg.mxu0
  %v251 = vlaneseq
  %v252 = vand.u32 %v251, 127
  %vm253 = vcmp.lt.s32.totalorder %v252, 32
  %v254 = vsel %vm253, %v246, -inf
  %vm255 = vcmask 517120
  %v256 = vsel %vm255, %v254, -inf
  %257 = vmax.xlane.f32.xlu0 %v256
  %v258 = vpop.xlane.xlu0 %257
  %v259 = vsel %vm253, -inf, %v246
  %v260 = vsel %vm255, %v259, -inf
  %261 = vmax.xlane.f32.xlu0 %v260
  %v262 = vpop.xlane.xlu0 %261
  %v263 = vsel %vm253, %v258, %v262
  %v264 = vsub.f32 %v246, %v263
  %v265 = vmul.f32 %v264, 1.442695
  %v266 = vpow.pop %v265
  %v267 = vsel %vm253, %v266, 0.0
  %v268 = vsel %vm255, %v267, 0.0
  %269 = vadd.xlane.f32.xlu0 %v268
  %v270 = vpop.xlane.xlu0 %269
  %v271 = vsel %vm253, 0.0, %v266
  %v272 = vsel %vm255, %v271, 0.0
  %273 = vadd.xlane.f32.xlu0 %v272
  %v274 = vpop.xlane.xlu0 %273
  %v275 = vsel %vm253, %v270, %v274
  %v276 = vrcp.pop %v275
  %v277 = vmul.f32 %v266, %v276
  %278 = vst.msk [vmem:[%s5] sm:$0x3] %vm255, %v277
  // Predicated region
  $region22: #{dense_policy_head.1} parent=0 // pred_check
    _
  $region23: #{dense_policy_head.1} parent=0 // pred_check_branch
    %280 = sbr.rel (0) target = $region25
  $region24: #{dense_policy_head.1} parent=0 // pred_region
    _
  $region25: #{dense_policy_head.1} parent=0 // pred_fallthru
    _
  // Predicated region
  $region26: #{dense_policy_head.1} parent=0 // pred_check
    _
  $region27: #{dense_policy_head.1} parent=0 // pred_check_branch
    %282 = sbr.rel (0) target = $region29
  $region28: #{dense_policy_head.1} parent=0 // pred_region
    _
  $region29: #{dense_policy_head.1} parent=0 // pred_fallthru
    _

</llo_original>
